<compile_context>
chip_gen: v6e
topology: v6e:2x2x1
jax: 0.10.0
libtpu: 0.0.40
codegen_flags: <defaults>
</compile_context>

<pallas_src>
import jax
import jax.numpy as jnp
from jax.experimental import pallas as pl
from jax.experimental.pallas import tpu as pltpu


def _round_up(x, m):
    return ((x + m - 1) // m) * m


def _make_fusion_kernel(num_hidden):
    """Build a fused MLP kernel for a fixed number of hidden layers (>= 1)."""

    def kernel(xs_ref, xf_ref, *refs):
        # refs = (W1_s, W1_f, b1, W2, b2, ..., Wn, bn, w_out_row, b_out, out_ref)
        out_ref = refs[-1]
        p = refs[:-1]

        # ---- layer 1: concat fused into a split matmul (bf16 MXU, f32 acc) ----
        h = (jnp.dot(xs_ref[...], p[0][...], preferred_element_type=jnp.float32)
             + jnp.dot(xf_ref[...], p[1][...], preferred_element_type=jnp.float32)
             + p[2][...])
        h = jnp.maximum(h, 0.0)            # ReLU; dropout == identity at inference

        # ---- hidden layers 2..n ----
        idx = 3
        for _ in range(num_hidden - 1):
            w = p[idx][...]
            b = p[idx + 1][...]
            idx += 2
            h = jnp.dot(h.astype(w.dtype), w,
                        preferred_element_type=jnp.float32) + b
            h = jnp.maximum(h, 0.0)

        # ---- out_layer (H_last -> 1): VPU multiply + lane reduce (no N=1 MXU pass) ----
        w_out = p[idx][...]                # (1, H_last) f32
        b_out = p[idx + 1][...]            # (1, 1)      f32
        y = jnp.sum(h * w_out, axis=-1, keepdims=True) + b_out   # (TB, 1) f32
        out_ref[...] = y.astype(out_ref.dtype)

    return kernel


def fusion_forward(x_smiles_enc, x_feature_enc, weights, biases, *,
                   block_batch=256, compute_dtype=jnp.bfloat16):
    """Fused Fusion-module forward.

    weights[i]: (in_i, out_i) f32  (transposed vs. torch Linear); biases[i]: (out_i,).
    The last (W, b) pair is the out_layer with out_i == 1.

    block_batch: batch tile size.  Budget it against VMEM: roughly
      2 (double-buffer) * TB * (in_features + max_hidden) * bytes  + resident weights,
    against ~32 MiB default scoped VMEM (v7x has 64 MiB physical; use ~half the
    v6e tile there).
    """
    batch, s_dim = x_smiles_enc.shape
    f_dim = x_feature_enc.shape[1]
    num_hidden = len(weights) - 1
    assert num_hidden >= 1, "Fusion requires at least one hidden layer"

    # Batch tile: multiple of 8 (sublane), no bigger than the (rounded) batch.
    tb = _round_up(min(block_batch, batch), 8)
    nb = pl.cdiv(batch, tb)
    padded = nb * tb

    # Inputs: cast to the MXU compute dtype on the host (halves HBM read traffic
    # for bf16) and pad the batch to a multiple of the tile.
    xs = x_smiles_enc.astype(compute_dtype)
    xf = x_feature_enc.astype(compute_dtype)
    if padded != batch:
        pad = padded - batch
        xs = jnp.pad(xs, ((0, pad), (0, 0)))
        xf = jnp.pad(xf, ((0, pad), (0, 0)))

    # Parameters: split W1 along the concat axis (fuses the concat), cast hidden
    # weights to the compute dtype, keep biases / out_layer row in f32.
    w1 = weights[0]
    param_operands = [
        w1[:s_dim].astype(compute_dtype),                 # W1_s (S, H1)
        w1[s_dim:].astype(compute_dtype),                 # W1_f (F, H1)
        biases[0].reshape(1, -1).astype(jnp.float32),     # b1   (1, H1)
    ]
    for w, b in zip(weights[1:-1], biases[1:-1]):
        param_operands.append(w.astype(compute_dtype))
        param_operands.append(b.reshape(1, -1).astype(jnp.float32))
    param_operands.append(weights[-1].reshape(1, -1).astype(jnp.float32))  # (1, H_last)
    param_operands.append(biases[-1].reshape(1, 1).astype(jnp.float32))    # (1, 1)

    operands = [xs, xf] + param_operands

    # Block specs: activations tiled over batch, parameters VMEM-resident.
    in_specs = [
        pl.BlockSpec((tb, s_dim), lambda i: (i, 0)),
        pl.BlockSpec((tb, f_dim), lambda i: (i, 0)),
    ]
    in_specs += [pl.BlockSpec(op.shape, lambda i: (0, 0)) for op in param_operands]
    out_specs = pl.BlockSpec((tb, 1), lambda i: (i, 0))
    out_shape = jax.ShapeDtypeStruct((padded, 1), jnp.float32)

    # Cost estimate so XLA can overlap the surrounding graph with this call.
    flops = 2 * batch * sum(int(w.shape[0]) * int(w.shape[1]) for w in weights)
    bytes_accessed = int(sum(op.size * op.dtype.itemsize for op in operands)
                         + padded * 4)
    cost = pl.CostEstimate(flops=flops, transcendentals=0,
                           bytes_accessed=bytes_accessed)

    y = pl.pallas_call(
        _make_fusion_kernel(num_hidden),
        out_shape=out_shape,
        grid=(nb,),
        in_specs=in_specs,
        out_specs=out_specs,
        compiler_params=pltpu.CompilerParams(
            dimension_semantics=("parallel",)),
        cost_estimate=cost,
    )(*operands)

    # torch .squeeze(): drop all size-1 dims -> (batch,) (scalar if batch == 1).
    return jnp.squeeze(y[:batch])


def init_params(key, emb_size_all, hidden_dims):
    """Deterministic init for the Linear layers (weights stored as (in, out))."""
    dims = [emb_size_all] + list(hidden_dims)
    weights, biases = [], []
    for in_f, out_f in zip(dims, dims[1:]):
        key, kw, kb = jax.random.split(key, 3)
        bound = 1.0 / jnp.sqrt(in_f)
        weights.append(jax.random.uniform(kw, (in_f, out_f), jnp.float32, -bound, bound))
        biases.append(jax.random.uniform(kb, (out_f,), jnp.float32, -bound, bound))
    # out_layer: Linear(hidden_dims[-1], 1)
    key, kw, kb = jax.random.split(key, 3)
    bound = 1.0 / jnp.sqrt(dims[-1])
    weights.append(jax.random.uniform(kw, (dims[-1], 1), jnp.float32, -bound, bound))
    biases.append(jax.random.uniform(kb, (1,), jnp.float32, -bound, bound))
    return weights, biases


def reference_forward(x_smiles_enc, x_feature_enc, weights, biases,
                      compute_dtype=jnp.bfloat16):
    """Pure-JAX reference mirroring the kernel's dtype handling
    (bf16 MXU operands, f32 accumulation / activations, f32 out_layer)."""
    x = jnp.concatenate([x_smiles_enc, x_feature_enc], axis=-1).astype(compute_dtype)
    h = jnp.dot(x, weights[0].astype(compute_dtype),
                preferred_element_type=jnp.float32) + biases[0]
    h = jnp.maximum(h, 0.0)
    for w, b in zip(weights[1:-1], biases[1:-1]):
        h = jnp.dot(h.astype(compute_dtype), w.astype(compute_dtype),
                    preferred_element_type=jnp.float32) + b
        h = jnp.maximum(h, 0.0)
    y = jnp.dot(h, weights[-1], preferred_element_type=jnp.float32) + biases[-1]
    return jnp.squeeze(y)


if __name__ == "__main__":
    # Small config consistent with the module: emb_size_all = smiles_dim + feature_dim.
    batch = 16
    smiles_dim = 16
    feature_dim = 16
    emb_size_all = smiles_dim + feature_dim   # 32
    hidden_dims = [32, 16]

    key = jax.random.PRNGKey(0)
    k1, k2, k3 = jax.random.split(key, 3)
    x_smiles = jax.random.normal(k1, (batch, smiles_dim), jnp.float32)
    x_feature = jax.random.normal(k2, (batch, feature_dim), jnp.float32)
    weights, biases = init_params(k3, emb_size_all, hidden_dims)

    # block_batch=8 so the grid has 2 steps (exercises pipelining + resident weights).
    out = fusion_forward(x_smiles, x_feature, weights, biases,
                         block_batch=8, compute_dtype=jnp.bfloat16)
    out = jax.block_until_ready(out)

    ref = reference_forward(x_smiles, x_feature, weights, biases,
                            compute_dtype=jnp.bfloat16)
    assert out.shape == (batch,), out.shape
    assert jnp.allclose(out, ref, atol=1e-4, rtol=1e-4), (out, ref)

    print("KERNEL_OK")
</pallas_src>

<mosaic_0001>
module attributes {stable_mosaic.version = 11 : i64} {
  func.func @kernel(%arg0: i32, %arg1: memref<8x16xbf16, #tpu.memory_space<vmem>>, %arg2: memref<8x16xbf16, #tpu.memory_space<vmem>>, %arg3: memref<16x32xbf16, #tpu.memory_space<vmem>>, %arg4: memref<16x32xbf16, #tpu.memory_space<vmem>>, %arg5: memref<1x32xf32, #tpu.memory_space<vmem>>, %arg6: memref<32x16xbf16, #tpu.memory_space<vmem>>, %arg7: memref<1x16xf32, #tpu.memory_space<vmem>>, %arg8: memref<1x16xf32, #tpu.memory_space<vmem>>, %arg9: memref<1x1xf32, #tpu.memory_space<vmem>>, %arg10: memref<8x1xf32, #tpu.memory_space<vmem>>) attributes {dimension_semantics = [#tpu.dimension_semantics<parallel>], iteration_bounds = array<i64: 2>, scalar_prefetch = 0 : i64, scratch_operands = 0 : i64, tpu.core_type = #tpu.core_type<tc>, window_params = [{transform_indices = @transform_0, window_bounds = array<i64: 8, 16>}, {transform_indices = @transform_1, window_bounds = array<i64: 8, 16>}, {pipeline_mode = #tpu.pipeline_mode<synchronous>, transform_indices = @transform_2, window_bounds = array<i64: 16, 32>}, {pipeline_mode = #tpu.pipeline_mode<synchronous>, transform_indices = @transform_3, window_bounds = array<i64: 16, 32>}, {pipeline_mode = #tpu.pipeline_mode<synchronous>, transform_indices = @transform_4, window_bounds = array<i64: 1, 32>}, {pipeline_mode = #tpu.pipeline_mode<synchronous>, transform_indices = @transform_5, window_bounds = array<i64: 32, 16>}, {pipeline_mode = #tpu.pipeline_mode<synchronous>, transform_indices = @transform_6, window_bounds = array<i64: 1, 16>}, {pipeline_mode = #tpu.pipeline_mode<synchronous>, transform_indices = @transform_7, window_bounds = array<i64: 1, 16>}, {pipeline_mode = #tpu.pipeline_mode<synchronous>, transform_indices = @transform_8, window_bounds = array<i64: 1, 1>}, {transform_indices = @transform_9, window_bounds = array<i64: 8, 1>}]} {
    %c0 = arith.constant 0 : index
    %c0_0 = arith.constant 0 : index
    %0 = vector.load %arg1[%c0, %c0_0] : memref<8x16xbf16, #tpu.memory_space<vmem>>, vector<8x16xbf16>
    %c0_1 = arith.constant 0 : index
    %c0_2 = arith.constant 0 : index
    %1 = vector.load %arg3[%c0_1, %c0_2] : memref<16x32xbf16, #tpu.memory_space<vmem>>, vector<16x32xbf16>
    %cst = arith.constant dense<0.000000e+00> : vector<8x32xf32>
    %2 = tpu.matmul %0, %1, %cst {dimension_numbers = #tpu.dot_dimension_numbers<[1], [0], [0], [1], [0, 0, 1, 1], [], []>} : vector<8x16xbf16>, vector<16x32xbf16>, vector<8x32xf32> -> vector<8x32xf32>
    %c0_3 = arith.constant 0 : index
    %c0_4 = arith.constant 0 : index
    %3 = vector.load %arg2[%c0_3, %c0_4] : memref<8x16xbf16, #tpu.memory_space<vmem>>, vector<8x16xbf16>
    %c0_5 = arith.constant 0 : index
    %c0_6 = arith.constant 0 : index
    %4 = vector.load %arg4[%c0_5, %c0_6] : memref<16x32xbf16, #tpu.memory_space<vmem>>, vector<16x32xbf16>
    %cst_7 = arith.constant dense<0.000000e+00> : vector<8x32xf32>
    %5 = tpu.matmul %3, %4, %cst_7 {dimension_numbers = #tpu.dot_dimension_numbers<[1], [0], [0], [1], [0, 0, 1, 1], [], []>} : vector<8x16xbf16>, vector<16x32xbf16>, vector<8x32xf32> -> vector<8x32xf32>
    %6 = arith.addf %2, %5 : vector<8x32xf32>
    %c0_8 = arith.constant 0 : index
    %c0_9 = arith.constant 0 : index
    %7 = vector.load %arg5[%c0_8, %c0_9] : memref<1x32xf32, #tpu.memory_space<vmem>>, vector<1x32xf32>
    %8 = vector.broadcast %7 : vector<1x32xf32> to vector<8x32xf32>
    %9 = arith.addf %6, %8 : vector<8x32xf32>
    %cst_10 = arith.constant 0.000000e+00 : f32
    %10 = vector.broadcast %cst_10 : f32 to vector<8x32xf32>
    %11 = arith.maximumf %9, %10 : vector<8x32xf32>
    %c0_11 = arith.constant 0 : index
    %c0_12 = arith.constant 0 : index
    %12 = vector.load %arg6[%c0_11, %c0_12] : memref<32x16xbf16, #tpu.memory_space<vmem>>, vector<32x16xbf16>
    %c0_13 = arith.constant 0 : index
    %c0_14 = arith.constant 0 : index
    %13 = vector.load %arg7[%c0_13, %c0_14] : memref<1x16xf32, #tpu.memory_space<vmem>>, vector<1x16xf32>
    %14 = arith.truncf %11 : vector<8x32xf32> to vector<8x32xbf16>
    %cst_15 = arith.constant dense<0.000000e+00> : vector<8x16xf32>
    %15 = tpu.matmul %14, %12, %cst_15 {dimension_numbers = #tpu.dot_dimension_numbers<[1], [0], [0], [1], [0, 0, 1, 1], [], []>} : vector<8x32xbf16>, vector<32x16xbf16>, vector<8x16xf32> -> vector<8x16xf32>
    %16 = vector.broadcast %13 : vector<1x16xf32> to vector<8x16xf32>
    %17 = arith.addf %15, %16 : vector<8x16xf32>
    %cst_16 = arith.constant 0.000000e+00 : f32
    %18 = vector.broadcast %cst_16 : f32 to vector<8x16xf32>
    %19 = arith.maximumf %17, %18 : vector<8x16xf32>
    %c0_17 = arith.constant 0 : index
    %c0_18 = arith.constant 0 : index
    %20 = vector.load %arg8[%c0_17, %c0_18] : memref<1x16xf32, #tpu.memory_space<vmem>>, vector<1x16xf32>
    %c0_19 = arith.constant 0 : index
    %c0_20 = arith.constant 0 : index
    %21 = vector.load %arg9[%c0_19, %c0_20] : memref<1x1xf32, #tpu.memory_space<vmem>>, vector<1x1xf32>
    %22 = vector.broadcast %20 : vector<1x16xf32> to vector<8x16xf32>
    %23 = arith.mulf %19, %22 : vector<8x16xf32>
    %cst_21 = arith.constant dense<0.000000e+00> : vector<8xf32>
    %24 = vector.multi_reduction <add>, %23, %cst_21 [1] : vector<8x16xf32> to vector<8xf32>
    %25 = vector.shape_cast %24 : vector<8xf32> to vector<8x1xf32>
    %26 = vector.broadcast %21 : vector<1x1xf32> to vector<8x1xf32>
    %27 = arith.addf %25, %26 : vector<8x1xf32>
    %c0_22 = arith.constant 0 : index
    %c0_23 = arith.constant 0 : index
    %28 = vector.load %arg10[%c0_22, %c0_23] : memref<8x1xf32, #tpu.memory_space<vmem>>, vector<8x1xf32>
    tpu.vector_store %arg10[%c0_22, %c0_23], %27 {strides = array<i32>} : memref<8x1xf32, #tpu.memory_space<vmem>>, vector<8x1xf32>,
    return
  }
  func.func @transform_0(%arg0: i32) -> (i32, i32) {
    %c0_i32 = arith.constant 0 : i32
    %c0_i32_0 = arith.constant 0 : i32
    return %arg0, %c0_i32 : i32, i32
  }
  func.func @transform_1(%arg0: i32) -> (i32, i32) {
    %c0_i32 = arith.constant 0 : i32
    %c0_i32_0 = arith.constant 0 : i32
    return %arg0, %c0_i32 : i32, i32
  }
  func.func @transform_2(%arg0: i32) -> (i32, i32) {
    %c0_i32 = arith.constant 0 : i32
    %c0_i32_0 = arith.constant 0 : i32
    %c0_i32_1 = arith.constant 0 : i32
    return %c0_i32, %c0_i32_0 : i32, i32
  }
  func.func @transform_3(%arg0: i32) -> (i32, i32) {
    %c0_i32 = arith.constant 0 : i32
    %c0_i32_0 = arith.constant 0 : i32
    %c0_i32_1 = arith.constant 0 : i32
    return %c0_i32, %c0_i32_0 : i32, i32
  }
  func.func @transform_4(%arg0: i32) -> (i32, i32) {
    %c0_i32 = arith.constant 0 : i32
    %c0_i32_0 = arith.constant 0 : i32
    %c0_i32_1 = arith.constant 0 : i32
    return %c0_i32, %c0_i32_0 : i32, i32
  }
  func.func @transform_5(%arg0: i32) -> (i32, i32) {
    %c0_i32 = arith.constant 0 : i32
    %c0_i32_0 = arith.constant 0 : i32
    %c0_i32_1 = arith.constant 0 : i32
    return %c0_i32, %c0_i32_0 : i32, i32
  }
  func.func @transform_6(%arg0: i32) -> (i32, i32) {
    %c0_i32 = arith.constant 0 : i32
    %c0_i32_0 = arith.constant 0 : i32
    %c0_i32_1 = arith.constant 0 : i32
    return %c0_i32, %c0_i32_0 : i32, i32
  }
  func.func @transform_7(%arg0: i32) -> (i32, i32) {
    %c0_i32 = arith.constant 0 : i32
    %c0_i32_0 = arith.constant 0 : i32
    %c0_i32_1 = arith.constant 0 : i32
    return %c0_i32, %c0_i32_0 : i32, i32
  }
  func.func @transform_8(%arg0: i32) -> (i32, i32) {
    %c0_i32 = arith.constant 0 : i32
    %c0_i32_0 = arith.constant 0 : i32
    %c0_i32_1 = arith.constant 0 : i32
    return %c0_i32, %c0_i32_0 : i32, i32
  }
  func.func @transform_9(%arg0: i32) -> (i32, i32) {
    %c0_i32 = arith.constant 0 : i32
    %c0_i32_0 = arith.constant 0 : i32
    return %arg0, %c0_i32 : i32, i32
  }
}

</mosaic_0001>

<llo_original>
// kernel: tpu_custom_call.1
$region0: #{tpu_custom_call.1}
  #allocation0 [shape = 'u32[]', space=smem, size = 0x4, offset = 0x4, fixed_abs, tag = 'smem constant byte address 0x4 - core index']
  #allocation1 [shape = 'u32[144,128]{1,0:T(1,128)}', space=vmem, size = 0x12000, scoped, tag = 'internal scratch']
  #allocation2 [shape = 'f32[1,1]{1,0:T(1,128)S(1)}', space=vmem, size = 0x200, scoped, tag = 'scoped memory for tpu_custom_call.1']
  %s0 = inlined_call_operand.vmem [shape: bf16[16,16], index: 0, kind: input, shape index: {}]
  %s1 = inlined_call_operand.vmem [shape: bf16[16,16], index: 1, kind: input, shape index: {}]
  %s2 = inlined_call_operand.vmem [shape: bf16[16,32], index: 2, kind: input, shape index: {}]
  %s3 = inlined_call_operand.hbm [shape: bf16[16,32], index: 3, kind: input, shape index: {}]
  %s4 = inlined_call_operand.vmem [shape: f32[1,32], index: 4, kind: input, shape index: {}]
  %s5 = inlined_call_operand.vmem [shape: bf16[32,16], index: 5, kind: input, shape index: {}]
  %s6 = inlined_call_operand.vmem [shape: f32[1,16], index: 6, kind: input, shape index: {}]
  %s7 = inlined_call_operand.vmem [shape: f32[1,16], index: 7, kind: input, shape index: {}]
  %s8 = inlined_call_operand.<no memory space> [shape: f32[1,1], index: 8, kind: input, shape index: {}]
  %s9 = inlined_call_operand.vmem [shape: f32[16,1], index: 9, kind: output, shape index: {}]
  %s10 = sld [smem:[#allocation0]]
  $region73: #{tpu_custom_call.1} parent=0
    _
  %s12 = ssub.s32 1, %s10
  %s13 = scalar_select 0, %s12, %s10
  %v14 = vstv %s8
  %15 = vst [vmem:[#allocation2] sm:$0x1] %v14
  $region1: #{tpu_custom_call.1} parent=0
    #allocation3 [shape = 'u8[4096]{0}', space=vmem, size = 0x1000, scoped, tag = 'input window, operand 3, single buffered']
    #allocation4 [shape = 's32[2]{0}', space=sflag, size = 0x8, scoped, tag = 'scoped memory for tpu_custom_call.1']
    %16 = vsyncpa [#allocation4], 0
    loop: start=0, step=1, limit=4
    $region2: #{tpu_custom_call.1} parent=1 // loop_pre_header
      _
    $region3: #{tpu_custom_call.1} parent=1 // loop_header
      %s18 = sphi 0, %s22
      %p19 = scmp.ge.s32.totalorder %s18, 4
      %s28 = sphi 0, %s30
      %s31 = sphi 0, %s28
      %s32 = sphi 0, %s31
      %s48 = sphi 0, %s32
      %s54 = sphi 0, %s56
      %s57 = sphi 0, %s54
      %s58 = sphi 0, %s57
      %s74 = sphi 0, %s58
      %s78 = sphi 0, %s78
      %s80 = sphi 0, %s78
      %s81 = sphi 0, %s80
      %s95 = sphi 0, %s81
      %s99 = sphi 0, %s99
      %s101 = sphi 0, %s99
      %s102 = sphi 0, %s101
      %s116 = sphi 0, %s102
      %s120 = sphi 0, %s120
      %s122 = sphi 0, %s120
      %s123 = sphi 0, %s122
      %s137 = sphi 0, %s123
      %s141 = sphi 0, %s141
      %s143 = sphi 0, %s141
      %s144 = sphi 0, %s143
      %s158 = sphi 0, %s144
      %s162 = sphi 0, %s162
      %s164 = sphi 0, %s162
      %s165 = sphi 0, %s164
      %s179 = sphi 0, %s165
      %s183 = sphi 0, %s183
      %s185 = sphi 0, %s183
      %s186 = sphi 0, %s185
      %s200 = sphi 0, %s186
      %s204 = sphi 0, %s204
      %s206 = sphi 0, %s204
      %s207 = sphi 0, %s206
      %s221 = sphi 0, %s207
      %s227 = sphi 0, %s229
      %s230 = sphi 0, %s227
      %s231 = sphi 0, %s230
      %s247 = sphi 0, %s231
    $region4: #{tpu_custom_call.1} parent=1 // loop_header_branch
      %21 = sbr.rel (%p19) target = $region8
    $region5: #{tpu_custom_call.1} parent=1 // loop_body
      %s23 = ssub.s32 %s18, 1
      %s24 = ssub.s32 %s18, 2
      %s25 = sadd.s32 %s18, 1
      %s26 = ssub.s32 %s18, %s25
      %p27 = scmp.eq.s32.totalorder %s26, 0
      %s29 = sadd.s32 %s28, 1
      %s30 = scalar_select %p27, %s28, %s29
      %p33 = pneg %p27
      %p34 = scmp.eq.s32.totalorder %s18, 1
      %p35 = por %p33, %p34
      %p36 = scmp.ne.s32.totalorder %s28, %s31
      %p37 = scmp.eq.s32.totalorder %s18, 0
      %p38 = por %p36, %p37
      %p39 = scmp.ne.s32.totalorder %s28, %s31
      %p40 = scmp.eq.s32.totalorder %s23, 1
      %p41 = por %p39, %p40
      %p42 = scmp.ne.s32.totalorder %s31, %s32
      %p43 = scmp.eq.s32.totalorder %s23, 0
      %p44 = por %p42, %p43
      %p45 = scmp.ne.s32.totalorder %s31, %s32
      %p46 = scmp.eq.s32.totalorder %s24, 1
      %p47 = por %p45, %p46
      %p49 = scmp.ne.s32.totalorder %s32, %s48
      %p50 = scmp.eq.s32.totalorder %s24, 0
      %p51 = por %p49, %p50
      %s52 = ssub.s32 %s18, %s25
      %p53 = scmp.eq.s32.totalorder %s52, 0
      %s55 = sadd.s32 %s54, 1
      %s56 = scalar_select %p53, %s54, %s55
      %p59 = pneg %p53
      %p60 = scmp.eq.s32.totalorder %s18, 1
      %p61 = por %p59, %p60
      %p62 = scmp.ne.s32.totalorder %s54, %s57
      %p63 = scmp.eq.s32.totalorder %s18, 0
      %p64 = por %p62, %p63
      %p65 = scmp.ne.s32.totalorder %s54, %s57
      %p66 = scmp.eq.s32.totalorder %s23, 1
      %p67 = por %p65, %p66
      %p68 = scmp.ne.s32.totalorder %s57, %s58
      %p69 = scmp.eq.s32.totalorder %s23, 0
      %p70 = por %p68, %p69
      %p71 = scmp.ne.s32.totalorder %s57, %s58
      %p72 = scmp.eq.s32.totalorder %s24, 1
      %p73 = por %p71, %p72
      %p75 = scmp.ne.s32.totalorder %s58, %s74
      %p76 = scmp.eq.s32.totalorder %s24, 0
      %p77 = por %p75, %p76
      %s79 = sadd.s32 %s78, 1
      %p82 = scmp.eq.s32.totalorder %s18, 1
      %p83 = scmp.ne.s32.totalorder %s78, %s80
      %p84 = scmp.eq.s32.totalorder %s18, 0
      %p85 = por %p83, %p84
      %p86 = scmp.ne.s32.totalorder %s78, %s80
      %p87 = scmp.eq.s32.totalorder %s23, 1
      %p88 = por %p86, %p87
      %p89 = scmp.ne.s32.totalorder %s80, %s81
      %p90 = scmp.eq.s32.totalorder %s23, 0
      %p91 = por %p89, %p90
      %p92 = scmp.ne.s32.totalorder %s80, %s81
      %p93 = scmp.eq.s32.totalorder %s24, 1
      %p94 = por %p92, %p93
      %p96 = scmp.ne.s32.totalorder %s81, %s95
      %p97 = scmp.eq.s32.totalorder %s24, 0
      %p98 = por %p96, %p97
      %s100 = sadd.s32 %s99, 1
      %p103 = scmp.eq.s32.totalorder %s18, 1
      %p104 = scmp.ne.s32.totalorder %s99, %s101
      %p105 = scmp.eq.s32.totalorder %s18, 0
      %p106 = por %p104, %p105
      %p107 = scmp.ne.s32.totalorder %s99, %s101
      %p108 = scmp.eq.s32.totalorder %s23, 1
      %p109 = por %p107, %p108
      %p110 = scmp.ne.s32.totalorder %s101, %s102
      %p111 = scmp.eq.s32.totalorder %s23, 0
      %p112 = por %p110, %p111
      %p113 = scmp.ne.s32.totalorder %s101, %s102
      %p114 = scmp.eq.s32.totalorder %s24, 1
      %p115 = por %p113, %p114
      %p117 = scmp.ne.s32.totalorder %s102, %s116
      %p118 = scmp.eq.s32.totalorder %s24, 0
      %p119 = por %p117, %p118
      %s121 = sadd.s32 %s120, 1
      %p124 = scmp.eq.s32.totalorder %s18, 1
      %p125 = scmp.ne.s32.totalorder %s120, %s122
      %p126 = scmp.eq.s32.totalorder %s18, 0
      %p127 = por %p125, %p126
      %p128 = scmp.ne.s32.totalorder %s120, %s122
      %p129 = scmp.eq.s32.totalorder %s23, 1
      %p130 = por %p128, %p129
      %p131 = scmp.ne.s32.totalorder %s122, %s123
      %p132 = scmp.eq.s32.totalorder %s23, 0
      %p133 = por %p131, %p132
      %p134 = scmp.ne.s32.totalorder %s122, %s123
      %p135 = scmp.eq.s32.totalorder %s24, 1
      %p136 = por %p134, %p135
      %p138 = scmp.ne.s32.totalorder %s123, %s137
      %p139 = scmp.eq.s32.totalorder %s24, 0
      %p140 = por %p138, %p139
      %s142 = sadd.s32 %s141, 1
      %p145 = scmp.eq.s32.totalorder %s18, 1
      %p146 = scmp.ne.s32.totalorder %s141, %s143
      %p147 = scmp.eq.s32.totalorder %s18, 0
      %p148 = por %p146, %p147
      %p149 = scmp.ne.s32.totalorder %s141, %s143
      %p150 = scmp.eq.s32.totalorder %s23, 1
      %p151 = por %p149, %p150
      %p152 = scmp.ne.s32.totalorder %s143, %s144
      %p153 = scmp.eq.s32.totalorder %s23, 0
      %p154 = por %p152, %p153
      %p155 = scmp.ne.s32.totalorder %s143, %s144
      %p156 = scmp.eq.s32.totalorder %s24, 1
      %p157 = por %p155, %p156
      %p159 = scmp.ne.s32.totalorder %s144, %s158
      %p160 = scmp.eq.s32.totalorder %s24, 0
      %p161 = por %p159, %p160
      %s163 = sadd.s32 %s162, 1
      %p166 = scmp.eq.s32.totalorder %s18, 1
      %p167 = scmp.ne.s32.totalorder %s162, %s164
      %p168 = scmp.eq.s32.totalorder %s18, 0
      %p169 = por %p167, %p168
      %p170 = scmp.ne.s32.totalorder %s162, %s164
      %p171 = scmp.eq.s32.totalorder %s23, 1
      %p172 = por %p170, %p171
      %p173 = scmp.ne.s32.totalorder %s164, %s165
      %p174 = scmp.eq.s32.totalorder %s23, 0
      %p175 = por %p173, %p174
      %p176 = scmp.ne.s32.totalorder %s164, %s165
      %p177 = scmp.eq.s32.totalorder %s24, 1
      %p178 = por %p176, %p177
      %p180 = scmp.ne.s32.totalorder %s165, %s179
      %p181 = scmp.eq.s32.totalorder %s24, 0
      %p182 = por %p180, %p181
      %s184 = sadd.s32 %s183, 1
      %p187 = scmp.eq.s32.totalorder %s18, 1
      %p188 = scmp.ne.s32.totalorder %s183, %s185
      %p189 = scmp.eq.s32.totalorder %s18, 0
      %p190 = por %p188, %p189
      %p191 = scmp.ne.s32.totalorder %s183, %s185
      %p192 = scmp.eq.s32.totalorder %s23, 1
      %p193 = por %p191, %p192
      %p194 = scmp.ne.s32.totalorder %s185, %s186
      %p195 = scmp.eq.s32.totalorder %s23, 0
      %p196 = por %p194, %p195
      %p197 = scmp.ne.s32.totalorder %s185, %s186
      %p198 = scmp.eq.s32.totalorder %s24, 1
      %p199 = por %p197, %p198
      %p201 = scmp.ne.s32.totalorder %s186, %s200
      %p202 = scmp.eq.s32.totalorder %s24, 0
      %p203 = por %p201, %p202
      %s205 = sadd.s32 %s204, 1
      %p208 = scmp.eq.s32.totalorder %s18, 1
      %p209 = scmp.ne.s32.totalorder %s204, %s206
      %p210 = scmp.eq.s32.totalorder %s18, 0
      %p211 = por %p209, %p210
      %p212 = scmp.ne.s32.totalorder %s204, %s206
      %p213 = scmp.eq.s32.totalorder %s23, 1
      %p214 = por %p212, %p213
      %p215 = scmp.ne.s32.totalorder %s206, %s207
      %p216 = scmp.eq.s32.totalorder %s23, 0
      %p217 = por %p215, %p216
      %p218 = scmp.ne.s32.totalorder %s206, %s207
      %p219 = scmp.eq.s32.totalorder %s24, 1
      %p220 = por %p218, %p219
      %p222 = scmp.ne.s32.totalorder %s207, %s221
      %p223 = scmp.eq.s32.totalorder %s24, 0
      %p224 = por %p222, %p223
      %s225 = ssub.s32 %s18, %s25
      %p226 = scmp.eq.s32.totalorder %s225, 0
      %s228 = sadd.s32 %s227, 1
      %s229 = scalar_select %p226, %s227, %s228
      %p232 = pneg %p226
      %p233 = scmp.eq.s32.totalorder %s18, 1
      %p234 = por %p232, %p233
      %p235 = scmp.ne.s32.totalorder %s227, %s230
      %p236 = scmp.eq.s32.totalorder %s18, 0
      %p237 = por %p235, %p236
      %p238 = scmp.ne.s32.totalorder %s227, %s230
      %p239 = scmp.eq.s32.totalorder %s23, 1
      %p240 = por %p238, %p239
      %p241 = scmp.ne.s32.totalorder %s230, %s231
      %p242 = scmp.eq.s32.totalorder %s23, 0
      %p243 = por %p241, %p242
      %p244 = scmp.ne.s32.totalorder %s230, %s231
      %p245 = scmp.eq.s32.totalorder %s24, 1
      %p246 = por %p244, %p245
      %p248 = scmp.ne.s32.totalorder %s231, %s247
      %p249 = scmp.eq.s32.totalorder %s24, 0
      %p250 = por %p248, %p249
      %p251 = scmp.le.s32.totalorder 1, %s18
      %p252 = scmp.lt.s32.totalorder %s18, 3
      %p253 = pnand %p251, %p252
      %p254 = pneg %p253
      // Predicated region
      $region9: #{tpu_custom_call.1} parent=5 // pred_check
        _
      $region10: #{tpu_custom_call.1} parent=5 // pred_check_branch
        %256 = sbr.rel (%p253) target = $region12
      $region11: #{tpu_custom_call.1} parent=5 // pred_region
        %s257 = ssub.s32 %s18, 1
        // Predicated region
        $region13: #{tpu_custom_call.1} parent=11 // pred_check
          %p258 = pneg %p91
        $region14: #{tpu_custom_call.1} parent=11 // pred_check_branch
          %260 = sbr.rel (%p258) target = $region16
        $region15: #{tpu_custom_call.1} parent=11 // pred_region
          _
        $region16: #{tpu_custom_call.1} parent=11 // pred_fallthru
          _
        // Predicated region
        $region17: #{tpu_custom_call.1} parent=11 // pred_check
          %p261 = pneg %p112
        $region18: #{tpu_custom_call.1} parent=11 // pred_check_branch
          %263 = sbr.rel (%p261) target = $region20
        $region19: #{tpu_custom_call.1} parent=11 // pred_region
          %s265 = ssub.s32 128, 128
          %266 = vsyncadd [#allocation4], %s265
          %s267 = sshll.u32 [#allocation3], 4
          %s268 = int_to_ptr.vmem [resolvable:$true] %s267
          %273 = dma.hbm_to_vmem [thread:$0]  %s3, 128, %s268, [#allocation4], 64, 64, 4
        $region20: #{tpu_custom_call.1} parent=11 // pred_fallthru
          _
        // Predicated region
        $region21: #{tpu_custom_call.1} parent=11 // pred_check
          %p274 = pneg %p133
        $region22: #{tpu_custom_call.1} parent=11 // pred_check_branch
          %276 = sbr.rel (%p274) target = $region24
        $region23: #{tpu_custom_call.1} parent=11 // pred_region
          _
        $region24: #{tpu_custom_call.1} parent=11 // pred_fallthru
          _
        // Predicated region
        $region25: #{tpu_custom_call.1} parent=11 // pred_check
          %p277 = pneg %p154
        $region26: #{tpu_custom_call.1} parent=11 // pred_check_branch
          %279 = sbr.rel (%p277) target = $region28
        $region27: #{tpu_custom_call.1} parent=11 // pred_region
          _
        $region28: #{tpu_custom_call.1} parent=11 // pred_fallthru
          _
        // Predicated region
        $region29: #{tpu_custom_call.1} parent=11 // pred_check
          %p280 = pneg %p175
        $region30: #{tpu_custom_call.1} parent=11 // pred_check_branch
          %282 = sbr.rel (%p280) target = $region32
        $region31: #{tpu_custom_call.1} parent=11 // pred_region
          _
        $region32: #{tpu_custom_call.1} parent=11 // pred_fallthru
          _
        // Predicated region
        $region33: #{tpu_custom_call.1} parent=11 // pred_check
          %p283 = pneg %p196
        $region34: #{tpu_custom_call.1} parent=11 // pred_check_branch
          %285 = sbr.rel (%p283) target = $region36
        $region35: #{tpu_custom_call.1} parent=11 // pred_region
          _
        $region36: #{tpu_custom_call.1} parent=11 // pred_fallthru
          _
        // Predicated region
        $region37: #{tpu_custom_call.1} parent=11 // pred_check
          %p286 = pneg %p217
        $region38: #{tpu_custom_call.1} parent=11 // pred_check_branch
          %288 = sbr.rel (%p286) target = $region40
        $region39: #{tpu_custom_call.1} parent=11 // pred_region
          _
        $region40: #{tpu_custom_call.1} parent=11 // pred_fallthru
          _
      $region12: #{tpu_custom_call.1} parent=5 // pred_fallthru
        _
      %p289 = scmp.lt.s32.totalorder %s18, 2
      // Predicated region
      $region41: #{tpu_custom_call.1} parent=5 // pred_check
        %p290 = pneg %p289
      $region42: #{tpu_custom_call.1} parent=5 // pred_check_branch
        %292 = sbr.rel (%p290) target = $region44
      $region43: #{tpu_custom_call.1} parent=5 // pred_region
        // Predicated region
        $region45: #{tpu_custom_call.1} parent=43 // pred_check
          %p293 = pneg %p38
        $region46: #{tpu_custom_call.1} parent=43 // pred_check_branch
          %295 = sbr.rel (%p293) target = $region48
        $region47: #{tpu_custom_call.1} parent=43 // pred_region
          %p296 = scmp.lt.s32.totalorder %s18, 1
          %s297 = scalar_select %p296, %s18, 1
          %s298 = smul.addr %s297, 4
          %s299 = scalar_lea.vmem %s0, %s298
        $region48: #{tpu_custom_call.1} parent=43 // pred_fallthru
          _
        // Predicated region
        $region49: #{tpu_custom_call.1} parent=43 // pred_check
          %p300 = pneg %p64
        $region50: #{tpu_custom_call.1} parent=43 // pred_check_branch
          %302 = sbr.rel (%p300) target = $region52
        $region51: #{tpu_custom_call.1} parent=43 // pred_region
          %p303 = scmp.lt.s32.totalorder %s18, 1
          %s304 = scalar_select %p303, %s18, 1
          %s305 = smul.addr %s304, 4
          %s306 = scalar_lea.vmem %s1, %s305
        $region52: #{tpu_custom_call.1} parent=43 // pred_fallthru
          _
      $region44: #{tpu_custom_call.1} parent=5 // pred_fallthru
        _
      %p307 = scmp.le.s32.totalorder 1, %s18
      %p308 = scmp.lt.s32.totalorder %s18, 3
      %p309 = pnand %p307, %p308
      %p310 = pneg %p309
      // Predicated region
      $region53: #{tpu_custom_call.1} parent=5 // pred_check
        _
      $region54: #{tpu_custom_call.1} parent=5 // pred_check_branch
        %312 = sbr.rel (%p309) target = $region56
      $region55: #{tpu_custom_call.1} parent=5 // pred_region
        %s313 = ssub.s32 %s18, 1
        // Predicated region
        $region57: #{tpu_custom_call.1} parent=55 // pred_check
          %p314 = pneg %p112
        $region58: #{tpu_custom_call.1} parent=55 // pred_check_branch
          %316 = sbr.rel (%p314) target = $region60
        $region59: #{tpu_custom_call.1} parent=55 // pred_region
          %317 = dma.done [#allocation4], 128
        $region60: #{tpu_custom_call.1} parent=55 // pred_fallthru
          _
        %p318 = scmp.lt.s32.totalorder %s23, 1
        %s319 = scalar_select %p318, %s23, 1
        %s320 = smul.addr %s319, 4
        %s321 = scalar_lea.vmem %s0, %s320
        %p322 = pneg %p44
        %p323 = pneg %p41
        %p324 = scmp.lt.s32.totalorder %s23, 1
        %s325 = scalar_select %p324, %s23, 1
        %s326 = smul.addr %s325, 4
        %s327 = scalar_lea.vmem %s1, %s326
        %p328 = pneg %p70
        %p329 = pneg %p67
        %p330 = pneg %p91
        %p331 = pneg %p88
        %p332 = pneg %p112
        %p333 = pneg %p109
        %p334 = pneg %p133
        %p335 = pneg %p130
        %p336 = pneg %p154
        %p337 = pneg %p151
        %p338 = pneg %p175
        %p339 = pneg %p172
        %p340 = pneg %p196
        %p341 = pneg %p193
        %p342 = pneg %p217
        %p343 = pneg %p214
        %p344 = pneg %p243
        %p345 = pneg %p240
        %p346 = scmp.lt.s32.totalorder %s23, 1
        %s347 = scalar_select %p346, %s23, 1
        %s348 = smul.addr %s347, 8
        %s349 = scalar_lea.vmem %s9, %s348
        %p350 = scmp.lt.s32.totalorder %s23, 1
        %s351 = scalar_select %p350, %s23, 1
        %s352 = smul.addr %s351, 4
        %s353 = scalar_lea.vmem %s0, %s352
        %p354 = scmp.lt.s32.totalorder %s23, 1
        %s355 = scalar_select %p354, %s23, 1
        %s356 = smul.addr %s355, 4
        %s357 = scalar_lea.vmem %s1, %s356
        %p358 = scmp.lt.s32.totalorder %s23, 1
        %s359 = scalar_select %p358, %s23, 1
        %s360 = smul.addr %s359, 8
        %s361 = scalar_lea.vmem %s9, %s360
        %v363 = vld [vmem:[%s353] sm:$0xf]
        %v364 = vld [vmem:[%s2] sm:$0xf]
        %v365 = vld [vmem:[%s2 + $0x4] sm:$0xf]
        %v366 = vld [vmem:[%s357] sm:$0xf]
        %v367 = vld [vmem:[#allocation3] sm:$0xf]
        %v368 = vld [vmem:[#allocation3 + $0x4] sm:$0xf]
        %v371 = vunpack.c.l.b16 %v367
        %v372 = vunpack.c.l.b16 %v368
        %v373 = vpack.c.b16 %v372, %v371
        %vm375 = vcmask 130048
        %v377 = vsel %vm375, %v366, 0
        %379 = vmatprep.subr.bf16.mxu0 0
        %380 = vmatpush1.bf16.msra.mxu0 0
        %381 = vmatprep.subr.bf16.mxu0 0
        %382 = vmatpush1.bf16.msra.mxu0 0
        %383 = vmatprep.subr.bf16.mxu0 0
        %384 = vmatpush1.bf16.msra.mxu0 0
        %385 = vmatprep.subr.bf16.mxu0 0
        %386 = vmatpush1.bf16.msra.mxu0 0
        %387 = vmatprep.subr.bf16.mxu0 0
        %388 = vmatpush1.bf16.msra.mxu0 0
        %389 = vmatprep.subr.bf16.mxu0 0
        %390 = vmatpush1.bf16.msra.mxu0 0
        %391 = vmatprep.subr.bf16.mxu0 0
        %392 = vmatpush1.bf16.msra.mxu0 0
        %393 = vmatprep.subr.bf16.mxu0 0
        %394 = vmatpush1.bf16.msra.mxu0 %v373
        %395 = vmatprep.subr.bf16.mxu0 0
        %396 = vmatpush2.bf16.msra.mxu0 0
        %397 = vmatprep.subr.bf16.mxu0 0
        %398 = vmatpush2.bf16.msra.mxu0 0
        %399 = vmatprep.subr.bf16.mxu0 0
        %400 = vmatpush2.bf16.msra.mxu0 0
        %401 = vmatprep.subr.bf16.mxu0 0
        %402 = vmatpush2.bf16.msra.mxu0 0
        %403 = vmatprep.subr.bf16.mxu0 0
        %404 = vmatpush2.bf16.msra.mxu0 0
        %405 = vmatprep.subr.bf16.mxu0 0
        %406 = vmatpush2.bf16.msra.mxu0 0
        %407 = vmatprep.subr.bf16.mxu0 0
        %408 = vmatpush2.bf16.msra.mxu0 0
        %409 = vmatprep.subr.bf16.mxu0 0
        %410 = vmatpush2.bf16.msra.mxu0 0
        %411 = vmatprep.mubr.bf16.mxu0 0
        %412 = vmatmul.mubr.bf16.gmra.mxu0 %v377
        %v413 = vpop.f32.mrf.mxu0
        %v414 = vadd.f32 0.0, %v413
        %v415 = vpop.f32.mrf.mxu0
        %v416 = vpop.f32.mrf.mxu0
        %v417 = vpop.f32.mrf.mxu0
        %418 = vdwg.mxu0
        %v421 = vunpack.c.l.b16 %v364
        %v422 = vunpack.c.l.b16 %v365
        %v423 = vpack.c.b16 %v422, %v421
        %v426 = vsel %vm375, %v363, 0
        %428 = vmatprep.subr.bf16.mxu0 0
        %429 = vmatpush1.bf16.msra.mxu0 0
        %430 = vmatprep.subr.bf16.mxu0 0
        %431 = vmatpush1.bf16.msra.mxu0 0
        %432 = vmatprep.subr.bf16.mxu0 0
        %433 = vmatpush1.bf16.msra.mxu0 0
        %434 = vmatprep.subr.bf16.mxu0 0
        %435 = vmatpush1.bf16.msra.mxu0 0
        %436 = vmatprep.subr.bf16.mxu0 0
        %437 = vmatpush1.bf16.msra.mxu0 0
        %438 = vmatprep.subr.bf16.mxu0 0
        %439 = vmatpush1.bf16.msra.mxu0 0
        %440 = vmatprep.subr.bf16.mxu0 0
        %441 = vmatpush1.bf16.msra.mxu0 0
        %442 = vmatprep.subr.bf16.mxu0 0
        %443 = vmatpush1.bf16.msra.mxu0 %v423
        %444 = vmatprep.subr.bf16.mxu0 0
        %445 = vmatpush2.bf16.msra.mxu0 0
        %446 = vmatprep.subr.bf16.mxu0 0
        %447 = vmatpush2.bf16.msra.mxu0 0
        %448 = vmatprep.subr.bf16.mxu0 0
        %449 = vmatpush2.bf16.msra.mxu0 0
        %450 = vmatprep.subr.bf16.mxu0 0
        %451 = vmatpush2.bf16.msra.mxu0 0
        %452 = vmatprep.subr.bf16.mxu0 0
        %453 = vmatpush2.bf16.msra.mxu0 0
        %454 = vmatprep.subr.bf16.mxu0 0
        %455 = vmatpush2.bf16.msra.mxu0 0
        %456 = vmatprep.subr.bf16.mxu0 0
        %457 = vmatpush2.bf16.msra.mxu0 0
        %458 = vmatprep.subr.bf16.mxu0 0
        %459 = vmatpush2.bf16.msra.mxu0 0
        %460 = vmatprep.mubr.bf16.mxu0 0
        %461 = vmatmul.mubr.bf16.gmra.mxu0 %v426
        %v462 = vpop.f32.mrf.mxu0
        %v463 = vadd.f32 %v414, %v462
        %v464 = vpop.f32.mrf.mxu0
        %v465 = vpop.f32.mrf.mxu0
        %v466 = vpop.f32.mrf.mxu0
        %467 = vdwg.mxu0
        %v468 = vld [vmem:[%s4] sm:$0x1]
        %v470 = vlaneseq
        %v471 = vshrl.u32 %v470, 7
        %v472 = vsub.s32 0, %v471
        %v473 = vrot.slane %v468, %v472
        %v475 = vadd.f32 %v463, %v473
        %v476 = vmax.f32 %v475, 0.0
        %v477 = vld [vmem:[%s5] sm:$0xf]
        %v478 = vld [vmem:[%s5 + $0x4] sm:$0xf]
        %v479 = vld [vmem:[%s5 + $0x8] sm:$0xf]
        %v480 = vld [vmem:[%s5 + $0xc] sm:$0xf]
        %v481 = vld [vmem:[%s6] sm:$0x1]
        %v482 = vpack.c.bf16 %v476, %v476
        %v484 = vlaneseq
        %v485 = vshrl.u32 %v484, 7
        %v486 = vsub.s32 0, %v485
        %v487 = vrot.slane %v481, %v486
        %v493 = vunpack.c.l.b16 %v477
        %v494 = vunpack.c.l.b16 %v478
        %v495 = vunpack.c.l.b16 %v479
        %v496 = vunpack.c.l.b16 %v480
        %v497 = vpack.c.b16 %v494, %v493
        %v498 = vpack.c.b16 %v496, %v495
        %vm501 = vcmask 261120
        %v503 = vsel %vm501, %v482, 0
        %505 = vmatprep.subr.bf16.mxu0 0
        %506 = vmatpush1.bf16.msra.mxu0 0
        %507 = vmatprep.subr.bf16.mxu0 0
        %508 = vmatpush1.bf16.msra.mxu0 0
        %509 = vmatprep.subr.bf16.mxu0 0
        %510 = vmatpush1.bf16.msra.mxu0 0
        %511 = vmatprep.subr.bf16.mxu0 0
        %512 = vmatpush1.bf16.msra.mxu0 0
        %513 = vmatprep.subr.bf16.mxu0 0
        %514 = vmatpush1.bf16.msra.mxu0 0
        %515 = vmatprep.subr.bf16.mxu0 0
        %516 = vmatpush1.bf16.msra.mxu0 0
        %517 = vmatprep.subr.bf16.mxu0 0
        %518 = vmatpush1.bf16.msra.mxu0 %v498
        %519 = vmatprep.subr.bf16.mxu0 0
        %520 = vmatpush1.bf16.msra.mxu0 %v497
        %521 = vmatprep.subr.bf16.mxu0 0
        %522 = vmatpush2.bf16.msra.mxu0 0
        %523 = vmatprep.subr.bf16.mxu0 0
        %524 = vmatpush2.bf16.msra.mxu0 0
        %525 = vmatprep.subr.bf16.mxu0 0
        %526 = vmatpush2.bf16.msra.mxu0 0
        %527 = vmatprep.subr.bf16.mxu0 0
        %528 = vmatpush2.bf16.msra.mxu0 0
        %529 = vmatprep.subr.bf16.mxu0 0
        %530 = vmatpush2.bf16.msra.mxu0 0
        %531 = vmatprep.subr.bf16.mxu0 0
        %532 = vmatpush2.bf16.msra.mxu0 0
        %533 = vmatprep.subr.bf16.mxu0 0
        %534 = vmatpush2.bf16.msra.mxu0 0
        %535 = vmatprep.subr.bf16.mxu0 0
        %536 = vmatpush2.bf16.msra.mxu0 0
        %537 = vmatprep.mubr.bf16.mxu0 0
        %538 = vmatmul.mubr.bf16.gmra.mxu0 %v503
        %v539 = vpop.f32.mrf.mxu0
        %v540 = vadd.f32 %v487, %v539
        %v541 = vpop.f32.mrf.mxu0
        %v542 = vpop.f32.mrf.mxu0
        %v543 = vpop.f32.mrf.mxu0
        %544 = vdwg.mxu0
        %v545 = vmax.f32 %v540, 0.0
        %v546 = vld [vmem:[%s7] sm:$0x1]
        %v547 = vld [vmem:[#allocation2] sm:$0x1]
        %v549 = vlaneseq
        %v550 = vshrl.u32 %v549, 7
        %v551 = vsub.s32 0, %v550
        %v552 = vrot.slane %v546, %v551
        %v554 = vmul.f32 %v545, %v552
        %v555 = vsel %vm375, %v554, 0.0
        %556 = vadd.xlane.f32.xlu0 %v555
        %v557 = vpop.xlane.xlu0 %556
        %v559 = vlaneseq
        %v560 = vshrl.u32 %v559, 7
        %v561 = vsub.s32 0, %v560
        %v562 = vrot.slane %v547, %v561
        %v564 = vadd.f32 %v557, %v562
        %vm565 = vcmask 7168
        %566 = vst.msk [vmem:[%s361] sm:$0xff] %vm565, %v564
        %p567 = scmp.lt.s32.totalorder %s23, 1
        %s568 = scalar_select %p567, %s23, 1
        %s569 = smul.addr %s568, 8
        %s570 = scalar_lea.vmem %s9, %s569
        // Predicated region
        $region61: #{tpu_custom_call.1} parent=55 // pred_check
          %p571 = pneg %p240
        $region62: #{tpu_custom_call.1} parent=55 // pred_check_branch
          %573 = sbr.rel (%p571) target = $region64
        $region63: #{tpu_custom_call.1} parent=55 // pred_region
          _
        $region64: #{tpu_custom_call.1} parent=55 // pred_fallthru
          _
      $region56: #{tpu_custom_call.1} parent=5 // pred_fallthru
        _
      %p574 = scmp.le.s32.totalorder 2, %s18
      // Predicated region
      $region65: #{tpu_custom_call.1} parent=5 // pred_check
        %p575 = pneg %p574
      $region66: #{tpu_custom_call.1} parent=5 // pred_check_branch
        %577 = sbr.rel (%p575) target = $region68
      $region67: #{tpu_custom_call.1} parent=5 // pred_region
        %s578 = ssub.s32 %s18, 2
        // Predicated region
        $region69: #{tpu_custom_call.1} parent=67 // pred_check
          %p579 = pneg %p246
        $region70: #{tpu_custom_call.1} parent=67 // pred_check_branch
          %581 = sbr.rel (%p579) target = $region72
        $region71: #{tpu_custom_call.1} parent=67 // pred_region
          %p582 = scmp.lt.s32.totalorder %s24, 1
          %s583 = scalar_select %p582, %s24, 1
          %s584 = smul.addr %s583, 8
          %s585 = scalar_lea.vmem %s9, %s584
        $region72: #{tpu_custom_call.1} parent=67 // pred_fallthru
          _
      $region68: #{tpu_custom_call.1} parent=5 // pred_fallthru
        _
    $region6: #{tpu_custom_call.1} parent=1 // loop_footer
      %s22 = sadd.s32 1, %s18
    $region7: #{tpu_custom_call.1} parent=1 // loop_footer_branch
      %17 = sbr.rel target = $region3
    $region8: #{tpu_custom_call.1} parent=1 // loop_exit
      _
    %586 = vsyncpa [#allocation4], 1
    %s587 = scalar_lea.sflag [#allocation4], 1
    %588 = vsyncpa %s587, 1

</llo_original>
